<compile_context>
chip_gen: v5e
topology: v5e:2x2
jax: 0.10.0
libtpu: 0.0.40
codegen_flags: <defaults>
</compile_context>

<pallas_src>
import functools

import jax
import jax.numpy as jnp
from jax.experimental import pallas as pl
from jax.experimental.pallas import tpu as pltpu

GAUSSIAN_STEPS = {1: 1.596, 2: 0.996, 3: 0.586, 4: 0.336,
                  5: 0.19, 6: 0.106, 7: 0.059, 8: 0.032}


def _round_up(a, b):
    return ((a + b - 1) // b) * b


def _mix_quant_conv_kernel(x_ref, w_ref, p_ref, o_ref, *, bits):
    """One M-tile of the im2col matmul with fused weight quantization.

    x_ref: (tm, K)            f32 im2col patches block (VMEM)
    w_ref: (n_bits, K, Cout)  f32 stacked per-branch flattened weights (VMEM)
    p_ref: (n_bits, 2)        f32 SMEM scalars: [:,0]=step_i, [:,1]=softmax(alpha)[i]
    o_ref: (tm, Cout)         f32 output block
    """
    mixed = None
    for i, bit in enumerate(bits):
        step = p_ref[i, 0]
        sw_i = p_ref[i, 1]
        lvls = float(2 ** bit) / 2.0
        w = w_ref[i]                                              # (K, Cout)
        q = jnp.clip(jnp.round(w / step), -lvls, lvls - 1.0)
        term = q * (step * sw_i)
        mixed = term if mixed is None else mixed + term
    # MXU matmul; the weight mixing above is cheap VPU filler under the dot.
    o_ref[...] = jnp.dot(x_ref[...], mixed,
                         preferred_element_type=jnp.float32).astype(o_ref.dtype)


def mix_quant_conv2d(x, weights, alpha, bits,
                     stride=(1, 1), padding=(1, 1), dilation=(1, 1)):
    """Forward pass of MixQuantConv2d. x: (N, Cin, H, W) f32 NCHW."""
    n_bits = len(bits)
    assert n_bits == len(weights) == alpha.shape[0]
    N, Cin, H, W = x.shape
    Cout, Cin_w, kh, kw = weights[0].shape
    assert Cin == Cin_w, "groups != 1 not supported"  # TODO(synk): grouped conv path
    s_h, s_w = stride
    p_h, p_w = padding
    d_h, d_w = dilation

    # ---- scalar prep (matches torch: softmax(alpha), step = gauss * W.std()) ----
    sw_mix = jax.nn.softmax(alpha.astype(jnp.float32))
    steps = jnp.stack([GAUSSIAN_STEPS[bit] * jnp.std(weights[i], ddof=1)
                       for i, bit in enumerate(bits)]).astype(jnp.float32)
    params = jnp.stack([steps, sw_mix], axis=1)                   # (n_bits, 2) -> SMEM

    # ---- stacked flattened per-branch weights: (n_bits, K, Cout) ----
    K = Cin * kh * kw
    w_stack = jnp.stack([w.reshape(Cout, K) for w in weights], axis=0)
    w_stack = jnp.transpose(w_stack, (0, 2, 1)).astype(jnp.float32)

    # ---- im2col (layout only; quantization + matmul happen in the kernel) ----
    Hout = (H + 2 * p_h - d_h * (kh - 1) - 1) // s_h + 1
    Wout = (W + 2 * p_w - d_w * (kw - 1) - 1) // s_w + 1
    x_pad = jnp.pad(x, ((0, 0), (0, 0), (p_h, p_h), (p_w, p_w)))
    cols = []
    for i in range(kh):
        for j in range(kw):
            h0 = i * d_h
            w0 = j * d_w
            cols.append(x_pad[:, :,
                              h0:h0 + s_h * (Hout - 1) + 1:s_h,
                              w0:w0 + s_w * (Wout - 1) + 1:s_w])
    patches = jnp.stack(cols, axis=2)                 # (N, Cin, kh*kw, Hout, Wout)
    patches = patches.reshape(N, K, Hout, Wout)       # ordering matches W.reshape(Cout, K)
    patches = jnp.transpose(patches, (0, 2, 3, 1)).reshape(N * Hout * Wout, K)

    M = N * Hout * Wout
    # M tiling: large blocks for HBM roofline, but cap each patches block at
    # ~4 MiB so the 4 live double-buffered blocks fit v7x's 32 MiB scoped VMEM.
    tm = min(2048, max(1, (4 * 1024 * 1024) // (K * 4)))
    tm = max(8, (tm // 8) * 8)                        # sublane-aligned
    tm = min(tm, _round_up(M, 8))
    M_pad = _round_up(M, tm)
    if M_pad != M:
        patches = jnp.pad(patches, ((0, M_pad - M), (0, 0)))

    grid = (M_pad // tm,)

    out2d = pl.pallas_call(
        functools.partial(_mix_quant_conv_kernel, bits=tuple(bits)),
        out_shape=jax.ShapeDtypeStruct((M_pad, Cout), jnp.float32),
        grid_spec=pl.GridSpec(
            grid=grid,
            in_specs=[
                pl.BlockSpec((tm, K), lambda i: (i, 0)),
                pl.BlockSpec((n_bits, K, Cout), lambda i: (0, 0, 0)),
                pl.BlockSpec(memory_space=pltpu.MemorySpace.SMEM),
            ],
            out_specs=pl.BlockSpec((tm, Cout), lambda i: (i, 0)),
        ),
        compiler_params=pltpu.CompilerParams(
            dimension_semantics=("parallel",),
        ),
    )(patches.astype(jnp.float32), w_stack, params)

    out = out2d[:M].reshape(N, Hout, Wout, Cout)
    return jnp.transpose(out, (0, 3, 1, 2))


def mix_quant_conv2d_ref(x, weights, alpha, bits,
                         stride=(1, 1), padding=(1, 1), dilation=(1, 1)):
    """Pure-JAX reference matching the PyTorch forward."""
    sw = jax.nn.softmax(alpha.astype(jnp.float32))
    mixed = jnp.zeros_like(weights[0])
    for i, bit in enumerate(bits):
        w = weights[i]
        step = GAUSSIAN_STEPS[bit] * jnp.std(w, ddof=1)
        lvls = float(2 ** bit) / 2.0
        q = jnp.clip(jnp.round(w / step), -lvls, lvls - 1.0) * step
        mixed = mixed + q * sw[i]
    return jax.lax.conv_general_dilated(
        x, mixed,
        window_strides=stride,
        padding=[(padding[0], padding[0]), (padding[1], padding[1])],
        rhs_dilation=dilation,
        dimension_numbers=("NCHW", "OIHW", "NCHW"))


if __name__ == "__main__":
    key = jax.random.PRNGKey(0)
    keys = jax.random.split(key, 4)

    N, Cin, H, W = 2, 4, 16, 16
    Cout, kh, kw = 8, 3, 3
    bits = [2, 4, 8]

    x = jax.random.normal(keys[0], (N, Cin, H, W), dtype=jnp.float32)
    weights = [0.1 * jax.random.normal(keys[1 + i], (Cout, Cin, kh, kw),
                                       dtype=jnp.float32)
               for i in range(len(bits))]
    alpha = jnp.full((len(bits),), 0.01, dtype=jnp.float32)  # module init value

    out = mix_quant_conv2d(x, weights, alpha, bits,
                           stride=(1, 1), padding=(1, 1), dilation=(1, 1))
    out = jax.block_until_ready(out)

    ref = mix_quant_conv2d_ref(x, weights, alpha, bits,
                               stride=(1, 1), padding=(1, 1), dilation=(1, 1))
    assert out.shape == ref.shape == (N, Cout, H, W)
    assert out.dtype == jnp.float32
    assert jnp.allclose(out, ref, rtol=1e-5, atol=1e-5), \
        f"max abs err {float(jnp.max(jnp.abs(out - ref)))}"

    print("KERNEL_OK")
</pallas_src>

<mosaic_0001>
module attributes {stable_mosaic.version = 11 : i64} {
  func.func @_mix_quant_conv_kernel(%arg0: i32, %arg1: memref<512x36xf32, #tpu.memory_space<vmem>>, %arg2: memref<3x36x8xf32, #tpu.memory_space<vmem>>, %arg3: memref<3x2xf32, #tpu.memory_space<smem>>, %arg4: memref<512x8xf32, #tpu.memory_space<vmem>>) attributes {dimension_semantics = [#tpu.dimension_semantics<parallel>], iteration_bounds = array<i64: 1>, scalar_prefetch = 0 : i64, scratch_operands = 0 : i64, tpu.core_type = #tpu.core_type<tc>, window_params = [{transform_indices = @transform_0, window_bounds = array<i64: 512, 36>}, {pipeline_mode = #tpu.pipeline_mode<synchronous>, transform_indices = @transform_1, window_bounds = array<i64: 3, 36, 8>}, {transform_indices = @transform_2, window_bounds = array<i64: 3, 2>}, {transform_indices = @transform_3, window_bounds = array<i64: 512, 8>}]} {
    %c0 = arith.constant 0 : index
    %c0_0 = arith.constant 0 : index
    %0 = memref.load %arg3[%c0, %c0_0] : memref<3x2xf32, #tpu.memory_space<smem>>
    %c0_1 = arith.constant 0 : index
    %c1 = arith.constant 1 : index
    %1 = memref.load %arg3[%c0_1, %c1] : memref<3x2xf32, #tpu.memory_space<smem>>
    %c0_2 = arith.constant 0 : index
    %c0_3 = arith.constant 0 : index
    %c0_4 = arith.constant 0 : index
    %2 = vector.load %arg2[%c0_2, %c0_3, %c0_4] : memref<3x36x8xf32, #tpu.memory_space<vmem>>, vector<1x36x8xf32>
    %3 = vector.shape_cast %2 : vector<1x36x8xf32> to vector<36x8xf32>
    %4 = vector.broadcast %0 : f32 to vector<36x8xf32>
    %5 = arith.divf %3, %4 : vector<36x8xf32>
    %6 = math.roundeven %5 : vector<36x8xf32>
    %cst = arith.constant -2.000000e+00 : f32
    %cst_5 = arith.constant 1.000000e+00 : f32
    %7 = vector.broadcast %cst : f32 to vector<36x8xf32>
    %8 = arith.maximumf %7, %6 : vector<36x8xf32>
    %9 = vector.broadcast %cst_5 : f32 to vector<36x8xf32>
    %10 = arith.minimumf %9, %8 : vector<36x8xf32>
    %11 = arith.mulf %0, %1 : f32
    %12 = vector.broadcast %11 : f32 to vector<36x8xf32>
    %13 = arith.mulf %10, %12 : vector<36x8xf32>
    %c1_6 = arith.constant 1 : index
    %c0_7 = arith.constant 0 : index
    %14 = memref.load %arg3[%c1_6, %c0_7] : memref<3x2xf32, #tpu.memory_space<smem>>
    %c1_8 = arith.constant 1 : index
    %c1_9 = arith.constant 1 : index
    %15 = memref.load %arg3[%c1_8, %c1_9] : memref<3x2xf32, #tpu.memory_space<smem>>
    %c1_10 = arith.constant 1 : index
    %c0_11 = arith.constant 0 : index
    %c0_12 = arith.constant 0 : index
    %16 = vector.load %arg2[%c1_10, %c0_11, %c0_12] : memref<3x36x8xf32, #tpu.memory_space<vmem>>, vector<1x36x8xf32>
    %17 = vector.shape_cast %16 : vector<1x36x8xf32> to vector<36x8xf32>
    %18 = vector.broadcast %14 : f32 to vector<36x8xf32>
    %19 = arith.divf %17, %18 : vector<36x8xf32>
    %20 = math.roundeven %19 : vector<36x8xf32>
    %cst_13 = arith.constant -8.000000e+00 : f32
    %cst_14 = arith.constant 7.000000e+00 : f32
    %21 = vector.broadcast %cst_13 : f32 to vector<36x8xf32>
    %22 = arith.maximumf %21, %20 : vector<36x8xf32>
    %23 = vector.broadcast %cst_14 : f32 to vector<36x8xf32>
    %24 = arith.minimumf %23, %22 : vector<36x8xf32>
    %25 = arith.mulf %14, %15 : f32
    %26 = vector.broadcast %25 : f32 to vector<36x8xf32>
    %27 = arith.mulf %24, %26 : vector<36x8xf32>
    %28 = arith.addf %13, %27 : vector<36x8xf32>
    %c2 = arith.constant 2 : index
    %c0_15 = arith.constant 0 : index
    %29 = memref.load %arg3[%c2, %c0_15] : memref<3x2xf32, #tpu.memory_space<smem>>
    %c2_16 = arith.constant 2 : index
    %c1_17 = arith.constant 1 : index
    %30 = memref.load %arg3[%c2_16, %c1_17] : memref<3x2xf32, #tpu.memory_space<smem>>
    %c2_18 = arith.constant 2 : index
    %c0_19 = arith.constant 0 : index
    %c0_20 = arith.constant 0 : index
    %31 = vector.load %arg2[%c2_18, %c0_19, %c0_20] : memref<3x36x8xf32, #tpu.memory_space<vmem>>, vector<1x36x8xf32>
    %32 = vector.shape_cast %31 : vector<1x36x8xf32> to vector<36x8xf32>
    %33 = vector.broadcast %29 : f32 to vector<36x8xf32>
    %34 = arith.divf %32, %33 : vector<36x8xf32>
    %35 = math.roundeven %34 : vector<36x8xf32>
    %cst_21 = arith.constant -1.280000e+02 : f32
    %cst_22 = arith.constant 1.270000e+02 : f32
    %36 = vector.broadcast %cst_21 : f32 to vector<36x8xf32>
    %37 = arith.maximumf %36, %35 : vector<36x8xf32>
    %38 = vector.broadcast %cst_22 : f32 to vector<36x8xf32>
    %39 = arith.minimumf %38, %37 : vector<36x8xf32>
    %40 = arith.mulf %29, %30 : f32
    %41 = vector.broadcast %40 : f32 to vector<36x8xf32>
    %42 = arith.mulf %39, %41 : vector<36x8xf32>
    %43 = arith.addf %28, %42 : vector<36x8xf32>
    %c0_23 = arith.constant 0 : index
    %c0_24 = arith.constant 0 : index
    %44 = vector.load %arg1[%c0_23, %c0_24] : memref<512x36xf32, #tpu.memory_space<vmem>>, vector<512x36xf32>
    %cst_25 = arith.constant dense<0.000000e+00> : vector<512x8xf32>
    %45 = tpu.matmul %44, %43, %cst_25 {dimension_numbers = #tpu.dot_dimension_numbers<[1], [0], [0], [1], [0, 0, 1, 1], [], []>} : vector<512x36xf32>, vector<36x8xf32>, vector<512x8xf32> -> vector<512x8xf32>
    %c0_26 = arith.constant 0 : index
    %c0_27 = arith.constant 0 : index
    %46 = vector.load %arg4[%c0_26, %c0_27] : memref<512x8xf32, #tpu.memory_space<vmem>>, vector<512x8xf32>
    tpu.vector_store %arg4[%c0_26, %c0_27], %45 {strides = array<i32>} : memref<512x8xf32, #tpu.memory_space<vmem>>, vector<512x8xf32>,
    return
  }
  func.func @transform_0(%arg0: i32) -> (i32, i32) {
    %c0_i32 = arith.constant 0 : i32
    %c0_i32_0 = arith.constant 0 : i32
    return %arg0, %c0_i32 : i32, i32
  }
  func.func @transform_1(%arg0: i32) -> (i32, i32, i32) {
    %c0_i32 = arith.constant 0 : i32
    %c0_i32_0 = arith.constant 0 : i32
    %c0_i32_1 = arith.constant 0 : i32
    %c0_i32_2 = arith.constant 0 : i32
    return %c0_i32, %c0_i32_0, %c0_i32_1 : i32, i32, i32
  }
  func.func @transform_2(%arg0: i32) -> (i32, i32) {
    %c0_i32 = arith.constant 0 : i32
    %c0_i32_0 = arith.constant 0 : i32
    %c0_i32_1 = arith.constant 0 : i32
    return %c0_i32, %c0_i32_0 : i32, i32
  }
  func.func @transform_3(%arg0: i32) -> (i32, i32) {
    %c0_i32 = arith.constant 0 : i32
    %c0_i32_0 = arith.constant 0 : i32
    return %arg0, %c0_i32 : i32, i32
  }
}

</mosaic_0001>

<llo_original>
// kernel: tpu_custom_call.1
$region0: #{tpu_custom_call.1}
  #allocation0 [shape = 'u32[]', space=smem, size = 0x4, offset = 0x4, fixed_abs, tag = 'smem constant byte address 0x4 - core index']
  #allocation1 [shape = 'u32[72,128]{1,0:T(1,128)}', space=vmem, size = 0x9000, scoped, tag = 'internal scratch']
  %s0 = inlined_call_operand.vmem [shape: f32[512,36], index: 0, kind: input, shape index: {}]
  %s1 = inlined_call_operand.vmem [shape: f32[3,36,8], index: 1, kind: input, shape index: {}]
  %s2 = inlined_call_operand.vmem [shape: f32[3,2], index: 2, kind: input, shape index: {}]
  %s3 = inlined_call_operand.vmem [shape: f32[512,8], index: 3, kind: output, shape index: {}]
  %s4 = sld [smem:[#allocation0]]
  $region26: #{tpu_custom_call.1} parent=0
    _
  %s6 = ssub.s32 1, %s4
  %s7 = scalar_select 0, %s6, %s4
  $region1: #{tpu_custom_call.1} parent=0
    #allocation2 [shape = 'u8[2048]{0}', space=smem, size = 0x800, scoped, tag = 'input window, operand 2, single buffered']
    #allocation3 [shape = 's32[1]{0}', space=sflag, size = 0x4, scoped, tag = 'scoped memory for tpu_custom_call.1']
    %8 = vsyncpa [#allocation3], 0
    // Predicated region
    $region2: #{tpu_custom_call.1} parent=1 // pred_check
      _
    $region3: #{tpu_custom_call.1} parent=1 // pred_check_branch
      %10 = sbr.rel (0) target = $region5
    $region4: #{tpu_custom_call.1} parent=1 // pred_region
      _
    $region5: #{tpu_custom_call.1} parent=1 // pred_fallthru
      _
    // Predicated region
    $region6: #{tpu_custom_call.1} parent=1 // pred_check
      _
    $region7: #{tpu_custom_call.1} parent=1 // pred_check_branch
      %12 = sbr.rel (0) target = $region9
    $region8: #{tpu_custom_call.1} parent=1 // pred_region
      _
    $region9: #{tpu_custom_call.1} parent=1 // pred_fallthru
      _
    // Predicated region
    $region10: #{tpu_custom_call.1} parent=1 // pred_check
      _
    $region11: #{tpu_custom_call.1} parent=1 // pred_check_branch
      %14 = sbr.rel (0) target = $region13
    $region12: #{tpu_custom_call.1} parent=1 // pred_region
      %16 = vsyncadd [#allocation3], 0
      %s18 = sshll.u32 %s2, 4
      %s19 = int_to_ptr.vmem [resolvable:$true] %s18
      %21 = dma.vmem_to_smem %s19, 64, [#allocation2], [#allocation3]
    $region13: #{tpu_custom_call.1} parent=1 // pred_fallthru
      _
    // Predicated region
    $region14: #{tpu_custom_call.1} parent=1 // pred_check
      _
    $region15: #{tpu_custom_call.1} parent=1 // pred_check_branch
      %23 = sbr.rel (0) target = $region17
    $region16: #{tpu_custom_call.1} parent=1 // pred_region
      %25 = dma.done [#allocation3], 64
    $region17: #{tpu_custom_call.1} parent=1 // pred_fallthru
      _
    %26 = sfence
    %s27 = sld [smem:[#allocation2]]
    %s28 = sld [smem:[#allocation2 + $0x1]]
    %v29 = vld [vmem:[%s1] sm:$0xff]
    %v30 = vld [vmem:[%s1 + $0x8] sm:$0xff]
    %v31 = vld [vmem:[%s1 + $0x10] sm:$0xff]
    %v32 = vld [vmem:[%s1 + $0x18] sm:$0xff]
    %v33 = vld [vmem:[%s1 + $0x20] sm:$0xf]
    %v34 = vstv %s27
    %v35 = vrcp.pop %v34
    %v36 = vmul.f32 %v34, %v35
    %v37 = vsub.f32 1.0, %v36
    %v38 = vmul.f32 %v35, %v37
    %v39 = vadd.f32 %v35, %v38
    %vm40 = vweird.f32 %v34
    %vm41 = vweird.f32 %v35
    %vm42 = vmor %vm40, %vm41
    %v43 = vsel %vm42, %v35, %v39
    %v44 = vand.u32 2147483647, %v34
    %vm45 = vcmp.eq.f32.partialorder %v44, 8.507059e+37
    %v46 = vand.u32 %v34, 2147483648
    %v47 = vor.u32 1.1754944e-38, %v46
    %v48 = vsel %vm45, %v47, %v43
    %v49 = vmul.f32 %v29, %v48
    %v50 = vmul.f32 %v30, %v48
    %v51 = vmul.f32 %v31, %v48
    %v52 = vmul.f32 %v32, %v48
    %v53 = vmul.f32 %v33, %v48
    %v54 = vround.ne.pseudo %v49
    %v55 = vround.ne.pseudo %v50
    %v56 = vround.ne.pseudo %v51
    %v57 = vround.ne.pseudo %v52
    %v58 = vround.ne.pseudo %v53
    %v59 = vmax.f32 %v54, -2.0
    %v60 = vmax.f32 %v55, -2.0
    %v61 = vmax.f32 %v56, -2.0
    %v62 = vmax.f32 %v57, -2.0
    %v63 = vmax.f32 %v58, -2.0
    %v64 = vmin.f32 %v59, 1.0
    %v65 = vmin.f32 %v60, 1.0
    %v66 = vmin.f32 %v61, 1.0
    %v67 = vmin.f32 %v62, 1.0
    %v68 = vmin.f32 %v63, 1.0
    %s69 = smul.f32 %s27, %s28
    %v70 = vstv %s69
    %v71 = vmul.f32 %v64, %v70
    %v72 = vmul.f32 %v65, %v70
    %v73 = vmul.f32 %v66, %v70
    %v74 = vmul.f32 %v67, %v70
    %v75 = vmul.f32 %v68, %v70
    %s76 = sld [smem:[#allocation2 + $0x80]]
    %s77 = sld [smem:[#allocation2 + $0x81]]
    %s78 = scalar_lea.vmem %s1, 40
    %v79 = vld [vmem:[%s78] sm:$0xff]
    %v80 = vld [vmem:[%s78 + $0x8] sm:$0xff]
    %v81 = vld [vmem:[%s78 + $0x10] sm:$0xff]
    %v82 = vld [vmem:[%s78 + $0x18] sm:$0xff]
    %v83 = vld [vmem:[%s78 + $0x20] sm:$0xf]
    %v84 = vstv %s76
    %v85 = vrcp.pop %v84
    %v86 = vmul.f32 %v84, %v85
    %v87 = vsub.f32 1.0, %v86
    %v88 = vmul.f32 %v85, %v87
    %v89 = vadd.f32 %v85, %v88
    %vm90 = vweird.f32 %v84
    %vm91 = vweird.f32 %v85
    %vm92 = vmor %vm90, %vm91
    %v93 = vsel %vm92, %v85, %v89
    %v94 = vand.u32 2147483647, %v84
    %vm95 = vcmp.eq.f32.partialorder %v94, 8.507059e+37
    %v96 = vand.u32 %v84, 2147483648
    %v97 = vor.u32 1.1754944e-38, %v96
    %v98 = vsel %vm95, %v97, %v93
    %v99 = vmul.f32 %v79, %v98
    %v100 = vmul.f32 %v80, %v98
    %v101 = vmul.f32 %v81, %v98
    %v102 = vmul.f32 %v82, %v98
    %v103 = vmul.f32 %v83, %v98
    %v104 = vround.ne.pseudo %v99
    %v105 = vround.ne.pseudo %v100
    %v106 = vround.ne.pseudo %v101
    %v107 = vround.ne.pseudo %v102
    %v108 = vround.ne.pseudo %v103
    %v109 = vmax.f32 %v104, -8.0
    %v110 = vmax.f32 %v105, -8.0
    %v111 = vmax.f32 %v106, -8.0
    %v112 = vmax.f32 %v107, -8.0
    %v113 = vmax.f32 %v108, -8.0
    %v114 = vmin.f32 %v109, 7.0
    %v115 = vmin.f32 %v110, 7.0
    %v116 = vmin.f32 %v111, 7.0
    %v117 = vmin.f32 %v112, 7.0
    %v118 = vmin.f32 %v113, 7.0
    %s119 = smul.f32 %s76, %s77
    %v120 = vstv %s119
    %v121 = vmul.f32 %v114, %v120
    %v122 = vmul.f32 %v115, %v120
    %v123 = vmul.f32 %v116, %v120
    %v124 = vmul.f32 %v117, %v120
    %v125 = vmul.f32 %v118, %v120
    %v126 = vadd.f32 %v71, %v121
    %v127 = vadd.f32 %v72, %v122
    %v128 = vadd.f32 %v73, %v123
    %v129 = vadd.f32 %v74, %v124
    %v130 = vadd.f32 %v75, %v125
    %s131 = sld [smem:[#allocation2 + $0x100]]
    %s132 = sld [smem:[#allocation2 + $0x101]]
    %s133 = scalar_lea.vmem %s1, 80
    %v134 = vld [vmem:[%s133] sm:$0xff]
    %v135 = vld [vmem:[%s133 + $0x8] sm:$0xff]
    %v136 = vld [vmem:[%s133 + $0x10] sm:$0xff]
    %v137 = vld [vmem:[%s133 + $0x18] sm:$0xff]
    %v138 = vld [vmem:[%s133 + $0x20] sm:$0xf]
    %v139 = vstv %s131
    %v140 = vrcp.pop %v139
    %v141 = vmul.f32 %v139, %v140
    %v142 = vsub.f32 1.0, %v141
    %v143 = vmul.f32 %v140, %v142
    %v144 = vadd.f32 %v140, %v143
    %vm145 = vweird.f32 %v139
    %vm146 = vweird.f32 %v140
    %vm147 = vmor %vm145, %vm146
    %v148 = vsel %vm147, %v140, %v144
    %v149 = vand.u32 2147483647, %v139
    %vm150 = vcmp.eq.f32.partialorder %v149, 8.507059e+37
    %v151 = vand.u32 %v139, 2147483648
    %v152 = vor.u32 1.1754944e-38, %v151
    %v153 = vsel %vm150, %v152, %v148
    %v154 = vmul.f32 %v134, %v153
    %v155 = vmul.f32 %v135, %v153
    %v156 = vmul.f32 %v136, %v153
    %v157 = vmul.f32 %v137, %v153
    %v158 = vmul.f32 %v138, %v153
    %v159 = vround.ne.pseudo %v154
    %v160 = vround.ne.pseudo %v155
    %v161 = vround.ne.pseudo %v156
    %v162 = vround.ne.pseudo %v157
    %v163 = vround.ne.pseudo %v158
    %v164 = vmax.f32 %v159, -128.0
    %v165 = vmax.f32 %v160, -128.0
    %v166 = vmax.f32 %v161, -128.0
    %v167 = vmax.f32 %v162, -128.0
    %v168 = vmax.f32 %v163, -128.0
    %v169 = vmin.f32 %v164, 127.0
    %v170 = vmin.f32 %v165, 127.0
    %v171 = vmin.f32 %v166, 127.0
    %v172 = vmin.f32 %v167, 127.0
    %v173 = vmin.f32 %v168, 127.0
    %s174 = smul.f32 %s131, %s132
    %v175 = vstv %s174
    %v176 = vmul.f32 %v169, %v175
    %v177 = vmul.f32 %v170, %v175
    %v178 = vmul.f32 %v171, %v175
    %v179 = vmul.f32 %v172, %v175
    %v180 = vmul.f32 %v173, %v175
    %v181 = vadd.f32 %v126, %v176
    %v182 = vadd.f32 %v127, %v177
    %v183 = vadd.f32 %v128, %v178
    %v184 = vadd.f32 %v129, %v179
    %v185 = vadd.f32 %v130, %v180
    %v186 = vld [vmem:[%s0] sm:$0xff]
    %v187 = vld [vmem:[%s0 + $0x8] sm:$0xff]
    %v188 = vld [vmem:[%s0 + $0x10] sm:$0xff]
    %v189 = vld [vmem:[%s0 + $0x18] sm:$0xff]
    %v190 = vld [vmem:[%s0 + $0x20] sm:$0xff]
    %v191 = vld [vmem:[%s0 + $0x28] sm:$0xff]
    %v192 = vld [vmem:[%s0 + $0x30] sm:$0xff]
    %v193 = vld [vmem:[%s0 + $0x38] sm:$0xff]
    %v194 = vld [vmem:[%s0 + $0x40] sm:$0xff]
    %v195 = vld [vmem:[%s0 + $0x48] sm:$0xff]
    %v196 = vld [vmem:[%s0 + $0x50] sm:$0xff]
    %v197 = vld [vmem:[%s0 + $0x58] sm:$0xff]
    %v198 = vld [vmem:[%s0 + $0x60] sm:$0xff]
    %v199 = vld [vmem:[%s0 + $0x68] sm:$0xff]
    %v200 = vld [vmem:[%s0 + $0x70] sm:$0xff]
    %v201 = vld [vmem:[%s0 + $0x78] sm:$0xff]
    %v202 = vld [vmem:[%s0 + $0x80] sm:$0xff]
    %v203 = vld [vmem:[%s0 + $0x88] sm:$0xff]
    %v204 = vld [vmem:[%s0 + $0x90] sm:$0xff]
    %v205 = vld [vmem:[%s0 + $0x98] sm:$0xff]
    %v206 = vld [vmem:[%s0 + $0xa0] sm:$0xff]
    %v207 = vld [vmem:[%s0 + $0xa8] sm:$0xff]
    %v208 = vld [vmem:[%s0 + $0xb0] sm:$0xff]
    %v209 = vld [vmem:[%s0 + $0xb8] sm:$0xff]
    %v210 = vld [vmem:[%s0 + $0xc0] sm:$0xff]
    %v211 = vld [vmem:[%s0 + $0xc8] sm:$0xff]
    %v212 = vld [vmem:[%s0 + $0xd0] sm:$0xff]
    %v213 = vld [vmem:[%s0 + $0xd8] sm:$0xff]
    %v214 = vld [vmem:[%s0 + $0xe0] sm:$0xff]
    %v215 = vld [vmem:[%s0 + $0xe8] sm:$0xff]
    %v216 = vld [vmem:[%s0 + $0xf0] sm:$0xff]
    %v217 = vld [vmem:[%s0 + $0xf8] sm:$0xff]
    %v218 = vld [vmem:[%s0 + $0x100] sm:$0xff]
    %v219 = vld [vmem:[%s0 + $0x108] sm:$0xff]
    %v220 = vld [vmem:[%s0 + $0x110] sm:$0xff]
    %v221 = vld [vmem:[%s0 + $0x118] sm:$0xff]
    %v222 = vld [vmem:[%s0 + $0x120] sm:$0xff]
    %v223 = vld [vmem:[%s0 + $0x128] sm:$0xff]
    %v224 = vld [vmem:[%s0 + $0x130] sm:$0xff]
    %v225 = vld [vmem:[%s0 + $0x138] sm:$0xff]
    %v226 = vld [vmem:[%s0 + $0x140] sm:$0xff]
    %v227 = vld [vmem:[%s0 + $0x148] sm:$0xff]
    %v228 = vld [vmem:[%s0 + $0x150] sm:$0xff]
    %v229 = vld [vmem:[%s0 + $0x158] sm:$0xff]
    %v230 = vld [vmem:[%s0 + $0x160] sm:$0xff]
    %v231 = vld [vmem:[%s0 + $0x168] sm:$0xff]
    %v232 = vld [vmem:[%s0 + $0x170] sm:$0xff]
    %v233 = vld [vmem:[%s0 + $0x178] sm:$0xff]
    %v234 = vld [vmem:[%s0 + $0x180] sm:$0xff]
    %v235 = vld [vmem:[%s0 + $0x188] sm:$0xff]
    %v236 = vld [vmem:[%s0 + $0x190] sm:$0xff]
    %v237 = vld [vmem:[%s0 + $0x198] sm:$0xff]
    %v238 = vld [vmem:[%s0 + $0x1a0] sm:$0xff]
    %v239 = vld [vmem:[%s0 + $0x1a8] sm:$0xff]
    %v240 = vld [vmem:[%s0 + $0x1b0] sm:$0xff]
    %v241 = vld [vmem:[%s0 + $0x1b8] sm:$0xff]
    %v242 = vld [vmem:[%s0 + $0x1c0] sm:$0xff]
    %v243 = vld [vmem:[%s0 + $0x1c8] sm:$0xff]
    %v244 = vld [vmem:[%s0 + $0x1d0] sm:$0xff]
    %v245 = vld [vmem:[%s0 + $0x1d8] sm:$0xff]
    %v246 = vld [vmem:[%s0 + $0x1e0] sm:$0xff]
    %v247 = vld [vmem:[%s0 + $0x1e8] sm:$0xff]
    %v248 = vld [vmem:[%s0 + $0x1f0] sm:$0xff]
    %v249 = vld [vmem:[%s0 + $0x1f8] sm:$0xff]
    %vm250 = vcmask 293888
    %v252 = vsel %vm250, %v186, 0
    %v255 = vsel %vm250, %v187, 0
    %v258 = vsel %vm250, %v188, 0
    %v261 = vsel %vm250, %v189, 0
    %v264 = vsel %vm250, %v190, 0
    %v267 = vsel %vm250, %v191, 0
    %v270 = vsel %vm250, %v192, 0
    %v273 = vsel %vm250, %v193, 0
    %v276 = vsel %vm250, %v194, 0
    %v279 = vsel %vm250, %v195, 0
    %v282 = vsel %vm250, %v196, 0
    %v285 = vsel %vm250, %v197, 0
    %v288 = vsel %vm250, %v198, 0
    %v291 = vsel %vm250, %v199, 0
    %v294 = vsel %vm250, %v200, 0
    %v297 = vsel %vm250, %v201, 0
    %v300 = vsel %vm250, %v202, 0
    %v303 = vsel %vm250, %v203, 0
    %v306 = vsel %vm250, %v204, 0
    %v309 = vsel %vm250, %v205, 0
    %v312 = vsel %vm250, %v206, 0
    %v315 = vsel %vm250, %v207, 0
    %v318 = vsel %vm250, %v208, 0
    %v321 = vsel %vm250, %v209, 0
    %v324 = vsel %vm250, %v210, 0
    %v327 = vsel %vm250, %v211, 0
    %v330 = vsel %vm250, %v212, 0
    %v333 = vsel %vm250, %v213, 0
    %v336 = vsel %vm250, %v214, 0
    %v339 = vsel %vm250, %v215, 0
    %v342 = vsel %vm250, %v216, 0
    %v345 = vsel %vm250, %v217, 0
    %v348 = vsel %vm250, %v218, 0
    %v351 = vsel %vm250, %v219, 0
    %v354 = vsel %vm250, %v220, 0
    %v357 = vsel %vm250, %v221, 0
    %v360 = vsel %vm250, %v222, 0
    %v363 = vsel %vm250, %v223, 0
    %v366 = vsel %vm250, %v224, 0
    %v369 = vsel %vm250, %v225, 0
    %v372 = vsel %vm250, %v226, 0
    %v375 = vsel %vm250, %v227, 0
    %v378 = vsel %vm250, %v228, 0
    %v381 = vsel %vm250, %v229, 0
    %v384 = vsel %vm250, %v230, 0
    %v387 = vsel %vm250, %v231, 0
    %v390 = vsel %vm250, %v232, 0
    %v393 = vsel %vm250, %v233, 0
    %v396 = vsel %vm250, %v234, 0
    %v399 = vsel %vm250, %v235, 0
    %v402 = vsel %vm250, %v236, 0
    %v405 = vsel %vm250, %v237, 0
    %v408 = vsel %vm250, %v238, 0
    %v411 = vsel %vm250, %v239, 0
    %v414 = vsel %vm250, %v240, 0
    %v417 = vsel %vm250, %v241, 0
    %v420 = vsel %vm250, %v242, 0
    %v423 = vsel %vm250, %v243, 0
    %v426 = vsel %vm250, %v244, 0
    %v429 = vsel %vm250, %v245, 0
    %v432 = vsel %vm250, %v246, 0
    %v435 = vsel %vm250, %v247, 0
    %v438 = vsel %vm250, %v248, 0
    %v441 = vsel %vm250, %v249, 0
    %vm443 = vcmask 1043456
    %v445 = vsel %vm443, %v185, 0
    %447 = vmatpush.msra.mxu0 0.0
    %448 = vmatpush.msra.mxu0 0.0
    %449 = vmatpush.msra.mxu0 0.0
    %450 = vmatpush.msra.mxu0 0.0
    %451 = vmatpush.msra.mxu0 0.0
    %452 = vmatpush.msra.mxu0 0.0
    %453 = vmatpush.msra.mxu0 0.0
    %454 = vmatpush.msra.mxu0 0.0
    %455 = vmatpush.msra.mxu0 0.0
    %456 = vmatpush.msra.mxu0 0.0
    %457 = vmatpush.msra.mxu0 0.0
    %458 = vmatpush.msra.mxu0 %v445
    %459 = vmatpush.msra.mxu0 %v184
    %460 = vmatpush.msra.mxu0 %v183
    %461 = vmatpush.msra.mxu0 %v182
    %462 = vmatpush.msra.mxu0 %v181
    %463 = vmatmul.f32.gmra.mxu0 %v252
    %v464 = vpop.f32.mrf.mxu0
    %v465 = vadd.f32 0.0, %v464
    %466 = vmatmul.f32.gmra.mxu0 %v255
    %v467 = vpop.f32.mrf.mxu0
    %v468 = vadd.f32 0.0, %v467
    %469 = vmatmul.f32.gmra.mxu0 %v258
    %v470 = vpop.f32.mrf.mxu0
    %v471 = vadd.f32 0.0, %v470
    %472 = vmatmul.f32.gmra.mxu0 %v261
    %v473 = vpop.f32.mrf.mxu0
    %v474 = vadd.f32 0.0, %v473
    %475 = vmatmul.f32.gmra.mxu0 %v264
    %v476 = vpop.f32.mrf.mxu0
    %v477 = vadd.f32 0.0, %v476
    %478 = vmatmul.f32.gmra.mxu0 %v267
    %v479 = vpop.f32.mrf.mxu0
    %v480 = vadd.f32 0.0, %v479
    %481 = vmatmul.f32.gmra.mxu0 %v270
    %v482 = vpop.f32.mrf.mxu0
    %v483 = vadd.f32 0.0, %v482
    %484 = vmatmul.f32.gmra.mxu0 %v273
    %v485 = vpop.f32.mrf.mxu0
    %v486 = vadd.f32 0.0, %v485
    %487 = vmatmul.f32.gmra.mxu0 %v276
    %v488 = vpop.f32.mrf.mxu0
    %v489 = vadd.f32 0.0, %v488
    %490 = vmatmul.f32.gmra.mxu0 %v279
    %v491 = vpop.f32.mrf.mxu0
    %v492 = vadd.f32 0.0, %v491
    %493 = vmatmul.f32.gmra.mxu0 %v282
    %v494 = vpop.f32.mrf.mxu0
    %v495 = vadd.f32 0.0, %v494
    %496 = vmatmul.f32.gmra.mxu0 %v285
    %v497 = vpop.f32.mrf.mxu0
    %v498 = vadd.f32 0.0, %v497
    %499 = vmatmul.f32.gmra.mxu0 %v288
    %v500 = vpop.f32.mrf.mxu0
    %v501 = vadd.f32 0.0, %v500
    %502 = vmatmul.f32.gmra.mxu0 %v291
    %v503 = vpop.f32.mrf.mxu0
    %v504 = vadd.f32 0.0, %v503
    %505 = vmatmul.f32.gmra.mxu0 %v294
    %v506 = vpop.f32.mrf.mxu0
    %v507 = vadd.f32 0.0, %v506
    %508 = vmatmul.f32.gmra.mxu0 %v297
    %v509 = vpop.f32.mrf.mxu0
    %v510 = vadd.f32 0.0, %v509
    %511 = vmatmul.f32.gmra.mxu0 %v300
    %v512 = vpop.f32.mrf.mxu0
    %v513 = vadd.f32 0.0, %v512
    %514 = vmatmul.f32.gmra.mxu0 %v303
    %v515 = vpop.f32.mrf.mxu0
    %v516 = vadd.f32 0.0, %v515
    %517 = vmatmul.f32.gmra.mxu0 %v306
    %v518 = vpop.f32.mrf.mxu0
    %v519 = vadd.f32 0.0, %v518
    %520 = vmatmul.f32.gmra.mxu0 %v309
    %v521 = vpop.f32.mrf.mxu0
    %v522 = vadd.f32 0.0, %v521
    %523 = vmatmul.f32.gmra.mxu0 %v312
    %v524 = vpop.f32.mrf.mxu0
    %v525 = vadd.f32 0.0, %v524
    %526 = vmatmul.f32.gmra.mxu0 %v315
    %v527 = vpop.f32.mrf.mxu0
    %v528 = vadd.f32 0.0, %v527
    %529 = vmatmul.f32.gmra.mxu0 %v318
    %v530 = vpop.f32.mrf.mxu0
    %v531 = vadd.f32 0.0, %v530
    %532 = vmatmul.f32.gmra.mxu0 %v321
    %v533 = vpop.f32.mrf.mxu0
    %v534 = vadd.f32 0.0, %v533
    %535 = vmatmul.f32.gmra.mxu0 %v324
    %v536 = vpop.f32.mrf.mxu0
    %v537 = vadd.f32 0.0, %v536
    %538 = vmatmul.f32.gmra.mxu0 %v327
    %v539 = vpop.f32.mrf.mxu0
    %v540 = vadd.f32 0.0, %v539
    %541 = vmatmul.f32.gmra.mxu0 %v330
    %v542 = vpop.f32.mrf.mxu0
    %v543 = vadd.f32 0.0, %v542
    %544 = vmatmul.f32.gmra.mxu0 %v333
    %v545 = vpop.f32.mrf.mxu0
    %v546 = vadd.f32 0.0, %v545
    %547 = vmatmul.f32.gmra.mxu0 %v336
    %v548 = vpop.f32.mrf.mxu0
    %v549 = vadd.f32 0.0, %v548
    %550 = vmatmul.f32.gmra.mxu0 %v339
    %v551 = vpop.f32.mrf.mxu0
    %v552 = vadd.f32 0.0, %v551
    %553 = vmatmul.f32.gmra.mxu0 %v342
    %v554 = vpop.f32.mrf.mxu0
    %v555 = vadd.f32 0.0, %v554
    %556 = vmatmul.f32.gmra.mxu0 %v345
    %v557 = vpop.f32.mrf.mxu0
    %v558 = vadd.f32 0.0, %v557
    %559 = vmatmul.f32.gmra.mxu0 %v348
    %v560 = vpop.f32.mrf.mxu0
    %v561 = vadd.f32 0.0, %v560
    %562 = vmatmul.f32.gmra.mxu0 %v351
    %v563 = vpop.f32.mrf.mxu0
    %v564 = vadd.f32 0.0, %v563
    %565 = vmatmul.f32.gmra.mxu0 %v354
    %v566 = vpop.f32.mrf.mxu0
    %v567 = vadd.f32 0.0, %v566
    %568 = vmatmul.f32.gmra.mxu0 %v357
    %v569 = vpop.f32.mrf.mxu0
    %v570 = vadd.f32 0.0, %v569
    %571 = vmatmul.f32.gmra.mxu0 %v360
    %v572 = vpop.f32.mrf.mxu0
    %v573 = vadd.f32 0.0, %v572
    %574 = vmatmul.f32.gmra.mxu0 %v363
    %v575 = vpop.f32.mrf.mxu0
    %v576 = vadd.f32 0.0, %v575
    %577 = vmatmul.f32.gmra.mxu0 %v366
    %v578 = vpop.f32.mrf.mxu0
    %v579 = vadd.f32 0.0, %v578
    %580 = vmatmul.f32.gmra.mxu0 %v369
    %v581 = vpop.f32.mrf.mxu0
    %v582 = vadd.f32 0.0, %v581
    %583 = vmatmul.f32.gmra.mxu0 %v372
    %v584 = vpop.f32.mrf.mxu0
    %v585 = vadd.f32 0.0, %v584
    %586 = vmatmul.f32.gmra.mxu0 %v375
    %v587 = vpop.f32.mrf.mxu0
    %v588 = vadd.f32 0.0, %v587
    %589 = vmatmul.f32.gmra.mxu0 %v378
    %v590 = vpop.f32.mrf.mxu0
    %v591 = vadd.f32 0.0, %v590
    %592 = vmatmul.f32.gmra.mxu0 %v381
    %v593 = vpop.f32.mrf.mxu0
    %v594 = vadd.f32 0.0, %v593
    %595 = vmatmul.f32.gmra.mxu0 %v384
    %v596 = vpop.f32.mrf.mxu0
    %v597 = vadd.f32 0.0, %v596
    %598 = vmatmul.f32.gmra.mxu0 %v387
    %v599 = vpop.f32.mrf.mxu0
    %v600 = vadd.f32 0.0, %v599
    %601 = vmatmul.f32.gmra.mxu0 %v390
    %v602 = vpop.f32.mrf.mxu0
    %v603 = vadd.f32 0.0, %v602
    %604 = vmatmul.f32.gmra.mxu0 %v393
    %v605 = vpop.f32.mrf.mxu0
    %v606 = vadd.f32 0.0, %v605
    %607 = vmatmul.f32.gmra.mxu0 %v396
    %v608 = vpop.f32.mrf.mxu0
    %v609 = vadd.f32 0.0, %v608
    %610 = vmatmul.f32.gmra.mxu0 %v399
    %v611 = vpop.f32.mrf.mxu0
    %v612 = vadd.f32 0.0, %v611
    %613 = vmatmul.f32.gmra.mxu0 %v402
    %v614 = vpop.f32.mrf.mxu0
    %v615 = vadd.f32 0.0, %v614
    %616 = vmatmul.f32.gmra.mxu0 %v405
    %v617 = vpop.f32.mrf.mxu0
    %v618 = vadd.f32 0.0, %v617
    %619 = vmatmul.f32.gmra.mxu0 %v408
    %v620 = vpop.f32.mrf.mxu0
    %v621 = vadd.f32 0.0, %v620
    %622 = vmatmul.f32.gmra.mxu0 %v411
    %v623 = vpop.f32.mrf.mxu0
    %v624 = vadd.f32 0.0, %v623
    %625 = vmatmul.f32.gmra.mxu0 %v414
    %v626 = vpop.f32.mrf.mxu0
    %v627 = vadd.f32 0.0, %v626
    %628 = vmatmul.f32.gmra.mxu0 %v417
    %v629 = vpop.f32.mrf.mxu0
    %v630 = vadd.f32 0.0, %v629
    %631 = vmatmul.f32.gmra.mxu0 %v420
    %v632 = vpop.f32.mrf.mxu0
    %v633 = vadd.f32 0.0, %v632
    %634 = vmatmul.f32.gmra.mxu0 %v423
    %v635 = vpop.f32.mrf.mxu0
    %v636 = vadd.f32 0.0, %v635
    %637 = vmatmul.f32.gmra.mxu0 %v426
    %v638 = vpop.f32.mrf.mxu0
    %v639 = vadd.f32 0.0, %v638
    %640 = vmatmul.f32.gmra.mxu0 %v429
    %v641 = vpop.f32.mrf.mxu0
    %v642 = vadd.f32 0.0, %v641
    %643 = vmatmul.f32.gmra.mxu0 %v432
    %v644 = vpop.f32.mrf.mxu0
    %v645 = vadd.f32 0.0, %v644
    %646 = vmatmul.f32.gmra.mxu0 %v435
    %v647 = vpop.f32.mrf.mxu0
    %v648 = vadd.f32 0.0, %v647
    %649 = vmatmul.f32.gmra.mxu0 %v438
    %v650 = vpop.f32.mrf.mxu0
    %v651 = vadd.f32 0.0, %v650
    %652 = vmatmul.f32.gmra.mxu0 %v441
    %v653 = vpop.f32.mrf.mxu0
    %v654 = vadd.f32 0.0, %v653
    %655 = vdwg.mxu0
    %vm656 = vcmask 64512
    %657 = vst.msk [vmem:[%s3] sm:$0xff] %vm656, %v465
    %658 = vst.msk [vmem:[%s3 + $0x8] sm:$0xff] %vm656, %v468
    %659 = vst.msk [vmem:[%s3 + $0x10] sm:$0xff] %vm656, %v471
    %660 = vst.msk [vmem:[%s3 + $0x18] sm:$0xff] %vm656, %v474
    %661 = vst.msk [vmem:[%s3 + $0x20] sm:$0xff] %vm656, %v477
    %662 = vst.msk [vmem:[%s3 + $0x28] sm:$0xff] %vm656, %v480
    %663 = vst.msk [vmem:[%s3 + $0x30] sm:$0xff] %vm656, %v483
    %664 = vst.msk [vmem:[%s3 + $0x38] sm:$0xff] %vm656, %v486
    %665 = vst.msk [vmem:[%s3 + $0x40] sm:$0xff] %vm656, %v489
    %666 = vst.msk [vmem:[%s3 + $0x48] sm:$0xff] %vm656, %v492
    %667 = vst.msk [vmem:[%s3 + $0x50] sm:$0xff] %vm656, %v495
    %668 = vst.msk [vmem:[%s3 + $0x58] sm:$0xff] %vm656, %v498
    %669 = vst.msk [vmem:[%s3 + $0x60] sm:$0xff] %vm656, %v501
    %670 = vst.msk [vmem:[%s3 + $0x68] sm:$0xff] %vm656, %v504
    %671 = vst.msk [vmem:[%s3 + $0x70] sm:$0xff] %vm656, %v507
    %672 = vst.msk [vmem:[%s3 + $0x78] sm:$0xff] %vm656, %v510
    %673 = vst.msk [vmem:[%s3 + $0x80] sm:$0xff] %vm656, %v513
    %674 = vst.msk [vmem:[%s3 + $0x88] sm:$0xff] %vm656, %v516
    %675 = vst.msk [vmem:[%s3 + $0x90] sm:$0xff] %vm656, %v519
    %676 = vst.msk [vmem:[%s3 + $0x98] sm:$0xff] %vm656, %v522
    %677 = vst.msk [vmem:[%s3 + $0xa0] sm:$0xff] %vm656, %v525
    %678 = vst.msk [vmem:[%s3 + $0xa8] sm:$0xff] %vm656, %v528
    %679 = vst.msk [vmem:[%s3 + $0xb0] sm:$0xff] %vm656, %v531
    %680 = vst.msk [vmem:[%s3 + $0xb8] sm:$0xff] %vm656, %v534
    %681 = vst.msk [vmem:[%s3 + $0xc0] sm:$0xff] %vm656, %v537
    %682 = vst.msk [vmem:[%s3 + $0xc8] sm:$0xff] %vm656, %v540
    %683 = vst.msk [vmem:[%s3 + $0xd0] sm:$0xff] %vm656, %v543
    %684 = vst.msk [vmem:[%s3 + $0xd8] sm:$0xff] %vm656, %v546
    %685 = vst.msk [vmem:[%s3 + $0xe0] sm:$0xff] %vm656, %v549
    %686 = vst.msk [vmem:[%s3 + $0xe8] sm:$0xff] %vm656, %v552
    %687 = vst.msk [vmem:[%s3 + $0xf0] sm:$0xff] %vm656, %v555
    %688 = vst.msk [vmem:[%s3 + $0xf8] sm:$0xff] %vm656, %v558
    %689 = vst.msk [vmem:[%s3 + $0x100] sm:$0xff] %vm656, %v561
    %690 = vst.msk [vmem:[%s3 + $0x108] sm:$0xff] %vm656, %v564
    %691 = vst.msk [vmem:[%s3 + $0x110] sm:$0xff] %vm656, %v567
    %692 = vst.msk [vmem:[%s3 + $0x118] sm:$0xff] %vm656, %v570
    %693 = vst.msk [vmem:[%s3 + $0x120] sm:$0xff] %vm656, %v573
    %694 = vst.msk [vmem:[%s3 + $0x128] sm:$0xff] %vm656, %v576
    %695 = vst.msk [vmem:[%s3 + $0x130] sm:$0xff] %vm656, %v579
    %696 = vst.msk [vmem:[%s3 + $0x138] sm:$0xff] %vm656, %v582
    %697 = vst.msk [vmem:[%s3 + $0x140] sm:$0xff] %vm656, %v585
    %698 = vst.msk [vmem:[%s3 + $0x148] sm:$0xff] %vm656, %v588
    %699 = vst.msk [vmem:[%s3 + $0x150] sm:$0xff] %vm656, %v591
    %700 = vst.msk [vmem:[%s3 + $0x158] sm:$0xff] %vm656, %v594
    %701 = vst.msk [vmem:[%s3 + $0x160] sm:$0xff] %vm656, %v597
    %702 = vst.msk [vmem:[%s3 + $0x168] sm:$0xff] %vm656, %v600
    %703 = vst.msk [vmem:[%s3 + $0x170] sm:$0xff] %vm656, %v603
    %704 = vst.msk [vmem:[%s3 + $0x178] sm:$0xff] %vm656, %v606
    %705 = vst.msk [vmem:[%s3 + $0x180] sm:$0xff] %vm656, %v609
    %706 = vst.msk [vmem:[%s3 + $0x188] sm:$0xff] %vm656, %v612
    %707 = vst.msk [vmem:[%s3 + $0x190] sm:$0xff] %vm656, %v615
    %708 = vst.msk [vmem:[%s3 + $0x198] sm:$0xff] %vm656, %v618
    %709 = vst.msk [vmem:[%s3 + $0x1a0] sm:$0xff] %vm656, %v621
    %710 = vst.msk [vmem:[%s3 + $0x1a8] sm:$0xff] %vm656, %v624
    %711 = vst.msk [vmem:[%s3 + $0x1b0] sm:$0xff] %vm656, %v627
    %712 = vst.msk [vmem:[%s3 + $0x1b8] sm:$0xff] %vm656, %v630
    %713 = vst.msk [vmem:[%s3 + $0x1c0] sm:$0xff] %vm656, %v633
    %714 = vst.msk [vmem:[%s3 + $0x1c8] sm:$0xff] %vm656, %v636
    %715 = vst.msk [vmem:[%s3 + $0x1d0] sm:$0xff] %vm656, %v639
    %716 = vst.msk [vmem:[%s3 + $0x1d8] sm:$0xff] %vm656, %v642
    %717 = vst.msk [vmem:[%s3 + $0x1e0] sm:$0xff] %vm656, %v645
    %718 = vst.msk [vmem:[%s3 + $0x1e8] sm:$0xff] %vm656, %v648
    %719 = vst.msk [vmem:[%s3 + $0x1f0] sm:$0xff] %vm656, %v651
    %720 = vst.msk [vmem:[%s3 + $0x1f8] sm:$0xff] %vm656, %v654
    // Predicated region
    $region18: #{tpu_custom_call.1} parent=1 // pred_check
      _
    $region19: #{tpu_custom_call.1} parent=1 // pred_check_branch
      %722 = sbr.rel (0) target = $region21
    $region20: #{tpu_custom_call.1} parent=1 // pred_region
      _
    $region21: #{tpu_custom_call.1} parent=1 // pred_fallthru
      _
    // Predicated region
    $region22: #{tpu_custom_call.1} parent=1 // pred_check
      _
    $region23: #{tpu_custom_call.1} parent=1 // pred_check_branch
      %724 = sbr.rel (0) target = $region25
    $region24: #{tpu_custom_call.1} parent=1 // pred_region
      _
    $region25: #{tpu_custom_call.1} parent=1 // pred_fallthru
      _
    %725 = vsyncpa [#allocation3], 1

</llo_original>
